<compile_context>
chip_gen: v5e
topology: v5e:2x2
jax: 0.10.0
libtpu: 0.0.40
codegen_flags: <defaults>
</compile_context>

<pallas_src>
import functools

import numpy as np
import jax
import jax.numpy as jnp
from jax import lax
from jax.experimental import pallas as pl
from jax.experimental.pallas import tpu as pltpu

# ----- small deterministic config (mirrors config['emb_dim'], config['hidden_size']) -----
VOCAB_SIZE = 64
EMB_DIM = 32
HIDDEN = 32
BATCH = 2
SEQ = 8


# --------------------------------------------------------------------------------------
# Pallas kernel
# --------------------------------------------------------------------------------------
def qa_lstm_kernel(tok_ref, gf_ref, gb_ref, whh_ref, sim_ref, *, batch, seq):
    """Fused biLSTM (q/a + fwd/bwd) -> max-pool over time -> cosine similarity.

    tok_ref : (T*2B, 1) int32  token ids, row t*2B + r (q rows stacked over a rows).
    gf_ref  : (V, 4*2H) bf16   fwd gate table  emb @ W_ih_f (+ full merged bias).
    gb_ref  : (V, 4*2H) bf16   bwd gate table  emb @ W_ih_b.
    whh_ref : (2H, 4*2H) bf16  block-diagonal merged recurrent weights.
    sim_ref : (B, 1) f32       output cosine similarity.

    Packed lane layout (no padding): slab0 lanes [0:128] = gate i | gate g,
    slab1 lanes [128:256] = gate f | gate o; within each gate, fwd hidden in
    the first H lanes, bwd hidden in the next H.  Sigmoid gates (i,f,o) are
    pre-scaled by 1/2 in the tables/weights so sigma(z) = 0.5*tanh(pre) + 0.5.
    State h/c/m layout: lanes [0:H] = fwd, [H:2H] = bwd.
    """
    B, T = batch, seq
    TB = 2 * B
    V = gf_ref.shape[0]
    H2, NG = whh_ref.shape      # H2 = 2*hidden, NG = 4*H2
    GP = NG // 2                # lanes per activation slab (two gates per slab)

    # --- in-kernel embedding-gate gather: one-hot(tokens) @ precomputed tables (MXU) ---
    ids = tok_ref[...]                                                     # (T*TB, 1)
    oh = (ids == lax.broadcasted_iota(jnp.int32, (T * TB, V), 1)).astype(jnp.bfloat16)
    gf_all = jnp.dot(oh, gf_ref[...], preferred_element_type=jnp.float32)  # (T*TB, NG)
    gb_all = jnp.dot(oh, gb_ref[...], preferred_element_type=jnp.float32)  # (T*TB, NG)

    h = jnp.zeros((TB, H2), jnp.float32)
    c = jnp.zeros((TB, H2), jnp.float32)
    m = jnp.full((TB, H2), -jnp.inf, jnp.float32)

    # --- fully unrolled fused recurrence: one (TB, 2H) @ (2H, NG) bf16 matmul per step ---
    for t in range(T):
        # fwd lanes read input t, bwd lanes read input T-1-t (disjoint lane slabs).
        pre = gf_all[t * TB:(t + 1) * TB, :] + gb_all[(T - 1 - t) * TB:(T - t) * TB, :]
        if t > 0:  # h == 0 at t == 0, skip the dot on the serial path
            pre = pre + jnp.dot(h.astype(jnp.bfloat16), whh_ref[...],
                                preferred_element_type=jnp.float32)
        t0 = jnp.tanh(pre[:, 0:GP])        # slab0: [i | g]
        t1 = jnp.tanh(pre[:, GP:NG])       # slab1: [f | o]
        i_g = 0.5 * t0[:, 0:H2] + 0.5      # sigma via tanh (scale folded into weights)
        g_g = t0[:, H2:GP]
        f_g = 0.5 * t1[:, 0:H2] + 0.5
        o_g = 0.5 * t1[:, H2:GP] + 0.5
        c = f_g * c + i_g * g_g
        h = o_g * jnp.tanh(c)
        m = jnp.maximum(m, h)

    # --- max-pooled biLSTM features -> cosine similarity (one-time epilogue) ---
    q = m[0:B, :]       # (B, 2H) question features [fwd | bwd]
    a = m[B:TB, :]      # (B, 2H) answer features
    eps = jnp.float32(1e-8)
    dot = jnp.sum(q * a, axis=-1, keepdims=True)
    qn = jnp.sqrt(jnp.sum(q * q, axis=-1, keepdims=True))
    an = jnp.sqrt(jnp.sum(a * a, axis=-1, keepdims=True))
    sim_ref[...] = dot / (jnp.maximum(qn, eps) * jnp.maximum(an, eps))


# --------------------------------------------------------------------------------------
# Parameter construction (raw, PyTorch-equivalent layout)
# --------------------------------------------------------------------------------------
def init_params(key, vocab_size=VOCAB_SIZE, emb_dim=EMB_DIM, hidden=HIDDEN):
    """Deterministic synthetic parameters in a PyTorch-equivalent (transposed)
    layout: W_ih (E, 4H), W_hh (H, 4H), bias (1, 4H), gate order [i,f,g,o].
    GloVe embeddings are replaced by a random table."""
    keys = jax.random.split(key, 9)
    k = 1.0 / jnp.sqrt(jnp.float32(hidden))
    u = lambda kk, shape: jax.random.uniform(kk, shape, jnp.float32, -k, k)
    emb = jax.random.normal(keys[0], (vocab_size, emb_dim), jnp.float32) * 0.1
    return {
        'emb': emb,
        'wih_f': u(keys[1], (emb_dim, 4 * hidden)),
        'whh_f': u(keys[2], (hidden, 4 * hidden)),
        'b_f': u(keys[3], (1, 4 * hidden)) + u(keys[4], (1, 4 * hidden)),  # b_ih + b_hh
        'wih_b': u(keys[5], (emb_dim, 4 * hidden)),
        'whh_b': u(keys[6], (hidden, 4 * hidden)),
        'b_b': u(keys[7], (1, 4 * hidden)) + u(keys[8], (1, 4 * hidden)),
    }


# --------------------------------------------------------------------------------------
# One-time weight preparation (host side, OUT of the per-call jit path)
# --------------------------------------------------------------------------------------
def prepare_params(params):
    """Fold embedding + input projection + bias into per-token gate tables and
    build the packed block-diagonal recurrent weight.  Called once."""
    emb = np.asarray(params['emb'], np.float32)
    wih_f = np.asarray(params['wih_f'], np.float32)
    whh_f = np.asarray(params['whh_f'], np.float32)
    b_f = np.asarray(params['b_f'], np.float32)
    wih_b = np.asarray(params['wih_b'], np.float32)
    whh_b = np.asarray(params['whh_b'], np.float32)
    b_b = np.asarray(params['b_b'], np.float32)

    V, _ = emb.shape
    H = whh_f.shape[0]
    H2 = 2 * H
    NG = 4 * H2
    assert H2 <= 128, "packed two-gates-per-slab layout assumes 2*hidden <= 128"

    # packed lane layout: slab0 = [i | g], slab1 = [f | o]; each gate: fwd H then bwd H.
    gate_base = {'i': 0, 'g': H2, 'f': 2 * H2, 'o': 3 * H2}
    gate_col = {'i': 0, 'f': 1, 'g': 2, 'o': 3}      # PyTorch gate order in 4H columns
    gate_scale = {'i': 0.5, 'f': 0.5, 'g': 1.0, 'o': 0.5}  # tanh-form sigmoid pre-scale

    proj_f = emb @ wih_f     # (V, 4H): x @ W_ih_f for every vocab entry
    proj_b = emb @ wih_b

    gtab_f = np.zeros((V, NG), np.float32)
    gtab_b = np.zeros((V, NG), np.float32)
    whh = np.zeros((H2, NG), np.float32)

    for g in 'ifgo':
        s = gate_scale[g]
        src = slice(gate_col[g] * H, (gate_col[g] + 1) * H)
        dst_f = slice(gate_base[g], gate_base[g] + H)
        dst_b = slice(gate_base[g] + H, gate_base[g] + 2 * H)
        gtab_f[:, dst_f] = (proj_f[:, src] + b_f[0, src]) * s   # fwd proj + fwd bias
        gtab_f[:, dst_b] = b_b[0, src] * s                      # full bwd bias (constant)
        gtab_b[:, dst_b] = proj_b[:, src] * s                   # bwd proj
        whh[0:H, dst_f] = whh_f[:, src] * s                     # fwd h -> fwd gate cols
        whh[H:H2, dst_b] = whh_b[:, src] * s                    # bwd h -> bwd gate cols

    return {
        'gtab_f': jnp.asarray(gtab_f, jnp.bfloat16),
        'gtab_b': jnp.asarray(gtab_b, jnp.bfloat16),
        'whh': jnp.asarray(whh, jnp.bfloat16),
    }


# --------------------------------------------------------------------------------------
# Forward wrapper (jitted, per-call glue is 3 tiny int32 ops)
# --------------------------------------------------------------------------------------
@jax.jit
def qa_lstm_forward(question, answer, prep):
    gtab_f, gtab_b, whh = prep['gtab_f'], prep['gtab_b'], prep['whh']
    B, T = question.shape
    TB = 2 * B

    # t-major token rows: row t*TB + r, r in [question rows | answer rows]
    tok = jnp.concatenate([question, answer], axis=0).astype(jnp.int32)   # (TB, T)
    tok_t = tok.T.reshape(T * TB, 1)                                      # (T*TB, 1)

    kern = functools.partial(qa_lstm_kernel, batch=B, seq=T)
    vspec = pl.BlockSpec(memory_space=pltpu.MemorySpace.VMEM)
    sim = pl.pallas_call(
        kern,
        out_shape=jax.ShapeDtypeStruct((B, 1), jnp.float32),
        in_specs=[vspec] * 4,
        out_specs=vspec,
    )(tok_t, gtab_f, gtab_b, whh)
    return sim[:, 0]  # (B,)


# --------------------------------------------------------------------------------------
# Pure-JAX reference (for correctness checking only)
# --------------------------------------------------------------------------------------
def _reference_forward(question, answer, params):
    emb = params['emb']
    hp = jax.lax.Precision.HIGHEST

    def run_dir(x_seq, wih, whh, b):
        B = x_seq.shape[0]
        H = whh.shape[0]

        def step(carry, x_t):
            h, c = carry
            gates = (jnp.dot(x_t, wih, precision=hp)
                     + jnp.dot(h, whh, precision=hp) + b)
            i = jax.nn.sigmoid(gates[:, 0:H])
            f = jax.nn.sigmoid(gates[:, H:2 * H])
            g = jnp.tanh(gates[:, 2 * H:3 * H])
            o = jax.nn.sigmoid(gates[:, 3 * H:4 * H])
            c = f * c + i * g
            h = o * jnp.tanh(c)
            return (h, c), h

        init = (jnp.zeros((B, H), jnp.float32), jnp.zeros((B, H), jnp.float32))
        _, hs = lax.scan(step, init, jnp.swapaxes(x_seq, 0, 1))
        return hs  # (T, B, H)

    def bilstm_maxpool(tok):
        x = jnp.take(emb, tok, axis=0)
        hf = run_dir(x, params['wih_f'], params['whh_f'], params['b_f'])
        hb = run_dir(x[:, ::-1, :], params['wih_b'], params['whh_b'], params['b_b'])
        out = jnp.concatenate([hf, hb[::-1]], axis=-1)       # (T, B, 2H)
        return jnp.max(out, axis=0)                           # (B, 2H)

    q = bilstm_maxpool(question)
    a = bilstm_maxpool(answer)
    eps = jnp.float32(1e-8)
    dot = jnp.sum(q * a, axis=-1)
    qn = jnp.sqrt(jnp.sum(q * q, axis=-1))
    an = jnp.sqrt(jnp.sum(a * a, axis=-1))
    return dot / (jnp.maximum(qn, eps) * jnp.maximum(an, eps))


if __name__ == "__main__":
    key = jax.random.PRNGKey(0)
    kp, kq, ka = jax.random.split(key, 3)
    params = init_params(kp)
    prep = prepare_params(params)   # one-time merged/packed weights (cached)

    question = jax.random.randint(kq, (BATCH, SEQ), 0, VOCAB_SIZE, dtype=jnp.int32)
    answer = jax.random.randint(ka, (BATCH, SEQ), 0, VOCAB_SIZE, dtype=jnp.int32)

    sim = qa_lstm_forward(question, answer, prep)
    jax.block_until_ready(sim)

    assert sim.shape == (BATCH,)
    assert bool(jnp.all(jnp.isfinite(sim)))
    assert bool(jnp.all(jnp.abs(sim) <= 1.0 + 1e-5))

    ref = _reference_forward(question, answer, params)
    max_err = float(jnp.max(jnp.abs(sim - ref)))
    # bf16 matmul operands (f32 accumulation) compound mild rounding over the
    # T-step recurrence; 2e-2 on a cosine-similarity output is still tight.
    assert max_err < 2e-2, f"kernel deviates from reference: {max_err}"

    print("KERNEL_OK")
</pallas_src>

<mosaic_0001>
module attributes {stable_mosaic.version = 11 : i64} {
  func.func @qa_lstm_kernel(%arg0: memref<32x1xi32, #tpu.memory_space<vmem>>, %arg1: memref<64x256xbf16, #tpu.memory_space<vmem>>, %arg2: memref<64x256xbf16, #tpu.memory_space<vmem>>, %arg3: memref<64x256xbf16, #tpu.memory_space<vmem>>, %arg4: memref<2x1xf32, #tpu.memory_space<vmem>>) attributes {dimension_semantics = [], scalar_prefetch = 0 : i64, scratch_operands = 0 : i64, tpu.core_type = #tpu.core_type<tc>} {
    %c0 = arith.constant 0 : index
    %c0_0 = arith.constant 0 : index
    %0 = vector.load %arg0[%c0, %c0_0] : memref<32x1xi32, #tpu.memory_space<vmem>>, vector<32x1xi32>
    %1 = tpu.iota {dimensions = array<i32: 1>} : vector<32x64xi32>
    %2 = vector.broadcast %0 : vector<32x1xi32> to vector<32x64xi32>
    %3 = arith.cmpi eq, %2, %1 : vector<32x64xi32>
    %4 = arith.extui %3 : vector<32x64xi1> to vector<32x64xi32>
    %5 = arith.sitofp %4 : vector<32x64xi32> to vector<32x64xf32>
    %6 = arith.truncf %5 : vector<32x64xf32> to vector<32x64xbf16>
    %c0_1 = arith.constant 0 : index
    %c0_2 = arith.constant 0 : index
    %7 = vector.load %arg1[%c0_1, %c0_2] : memref<64x256xbf16, #tpu.memory_space<vmem>>, vector<64x256xbf16>
    %cst = arith.constant dense<0.000000e+00> : vector<32x256xf32>
    %8 = tpu.matmul %6, %7, %cst {dimension_numbers = #tpu.dot_dimension_numbers<[1], [0], [0], [1], [0, 0, 1, 1], [], []>} : vector<32x64xbf16>, vector<64x256xbf16>, vector<32x256xf32> -> vector<32x256xf32>
    %c0_3 = arith.constant 0 : index
    %c0_4 = arith.constant 0 : index
    %9 = vector.load %arg2[%c0_3, %c0_4] : memref<64x256xbf16, #tpu.memory_space<vmem>>, vector<64x256xbf16>
    %cst_5 = arith.constant dense<0.000000e+00> : vector<32x256xf32>
    %10 = tpu.matmul %6, %9, %cst_5 {dimension_numbers = #tpu.dot_dimension_numbers<[1], [0], [0], [1], [0, 0, 1, 1], [], []>} : vector<32x64xbf16>, vector<64x256xbf16>, vector<32x256xf32> -> vector<32x256xf32>
    %cst_6 = arith.constant 0.000000e+00 : f32
    %11 = vector.broadcast %cst_6 : f32 to vector<4x64xf32>
    %cst_7 = arith.constant 0xFF800000 : f32
    %12 = vector.broadcast %cst_7 : f32 to vector<4x64xf32>
    %13 = vector.extract_strided_slice %8 {offsets = [0, 0], sizes = [4, 256], strides = [1, 1]} : vector<32x256xf32> to vector<4x256xf32>
    %14 = vector.extract_strided_slice %10 {offsets = [28, 0], sizes = [4, 256], strides = [1, 1]} : vector<32x256xf32> to vector<4x256xf32>
    %15 = arith.addf %13, %14 : vector<4x256xf32>
    %16 = vector.extract_strided_slice %15 {offsets = [0, 0], sizes = [4, 128], strides = [1, 1]} : vector<4x256xf32> to vector<4x128xf32>
    %17 = math.tanh %16 : vector<4x128xf32>
    %18 = vector.extract_strided_slice %15 {offsets = [0, 128], sizes = [4, 128], strides = [1, 1]} : vector<4x256xf32> to vector<4x128xf32>
    %19 = math.tanh %18 : vector<4x128xf32>
    %20 = vector.extract_strided_slice %17 {offsets = [0, 0], sizes = [4, 64], strides = [1, 1]} : vector<4x128xf32> to vector<4x64xf32>
    %cst_8 = arith.constant 5.000000e-01 : f32
    %21 = vector.broadcast %cst_8 : f32 to vector<4x64xf32>
    %22 = arith.mulf %21, %20 : vector<4x64xf32>
    %cst_9 = arith.constant 5.000000e-01 : f32
    %23 = vector.broadcast %cst_9 : f32 to vector<4x64xf32>
    %24 = arith.addf %22, %23 : vector<4x64xf32>
    %25 = vector.extract_strided_slice %17 {offsets = [0, 64], sizes = [4, 64], strides = [1, 1]} : vector<4x128xf32> to vector<4x64xf32>
    %26 = vector.extract_strided_slice %19 {offsets = [0, 0], sizes = [4, 64], strides = [1, 1]} : vector<4x128xf32> to vector<4x64xf32>
    %cst_10 = arith.constant 5.000000e-01 : f32
    %27 = vector.broadcast %cst_10 : f32 to vector<4x64xf32>
    %28 = arith.mulf %27, %26 : vector<4x64xf32>
    %cst_11 = arith.constant 5.000000e-01 : f32
    %29 = vector.broadcast %cst_11 : f32 to vector<4x64xf32>
    %30 = arith.addf %28, %29 : vector<4x64xf32>
    %31 = vector.extract_strided_slice %19 {offsets = [0, 64], sizes = [4, 64], strides = [1, 1]} : vector<4x128xf32> to vector<4x64xf32>
    %cst_12 = arith.constant 5.000000e-01 : f32
    %32 = vector.broadcast %cst_12 : f32 to vector<4x64xf32>
    %33 = arith.mulf %32, %31 : vector<4x64xf32>
    %cst_13 = arith.constant 5.000000e-01 : f32
    %34 = vector.broadcast %cst_13 : f32 to vector<4x64xf32>
    %35 = arith.addf %33, %34 : vector<4x64xf32>
    %36 = arith.mulf %30, %11 : vector<4x64xf32>
    %37 = arith.mulf %24, %25 : vector<4x64xf32>
    %38 = arith.addf %36, %37 : vector<4x64xf32>
    %39 = math.tanh %38 : vector<4x64xf32>
    %40 = arith.mulf %35, %39 : vector<4x64xf32>
    %41 = arith.maximumf %12, %40 : vector<4x64xf32>
    %42 = vector.extract_strided_slice %8 {offsets = [4, 0], sizes = [4, 256], strides = [1, 1]} : vector<32x256xf32> to vector<4x256xf32>
    %43 = vector.extract_strided_slice %10 {offsets = [24, 0], sizes = [4, 256], strides = [1, 1]} : vector<32x256xf32> to vector<4x256xf32>
    %44 = arith.addf %42, %43 : vector<4x256xf32>
    %45 = arith.truncf %40 : vector<4x64xf32> to vector<4x64xbf16>
    %c0_14 = arith.constant 0 : index
    %c0_15 = arith.constant 0 : index
    %46 = vector.load %arg3[%c0_14, %c0_15] : memref<64x256xbf16, #tpu.memory_space<vmem>>, vector<64x256xbf16>
    %cst_16 = arith.constant dense<0.000000e+00> : vector<4x256xf32>
    %47 = tpu.matmul %45, %46, %cst_16 {dimension_numbers = #tpu.dot_dimension_numbers<[1], [0], [0], [1], [0, 0, 1, 1], [], []>} : vector<4x64xbf16>, vector<64x256xbf16>, vector<4x256xf32> -> vector<4x256xf32>
    %48 = arith.addf %44, %47 : vector<4x256xf32>
    %49 = vector.extract_strided_slice %48 {offsets = [0, 0], sizes = [4, 128], strides = [1, 1]} : vector<4x256xf32> to vector<4x128xf32>
    %50 = math.tanh %49 : vector<4x128xf32>
    %51 = vector.extract_strided_slice %48 {offsets = [0, 128], sizes = [4, 128], strides = [1, 1]} : vector<4x256xf32> to vector<4x128xf32>
    %52 = math.tanh %51 : vector<4x128xf32>
    %53 = vector.extract_strided_slice %50 {offsets = [0, 0], sizes = [4, 64], strides = [1, 1]} : vector<4x128xf32> to vector<4x64xf32>
    %cst_17 = arith.constant 5.000000e-01 : f32
    %54 = vector.broadcast %cst_17 : f32 to vector<4x64xf32>
    %55 = arith.mulf %54, %53 : vector<4x64xf32>
    %cst_18 = arith.constant 5.000000e-01 : f32
    %56 = vector.broadcast %cst_18 : f32 to vector<4x64xf32>
    %57 = arith.addf %55, %56 : vector<4x64xf32>
    %58 = vector.extract_strided_slice %50 {offsets = [0, 64], sizes = [4, 64], strides = [1, 1]} : vector<4x128xf32> to vector<4x64xf32>
    %59 = vector.extract_strided_slice %52 {offsets = [0, 0], sizes = [4, 64], strides = [1, 1]} : vector<4x128xf32> to vector<4x64xf32>
    %cst_19 = arith.constant 5.000000e-01 : f32
    %60 = vector.broadcast %cst_19 : f32 to vector<4x64xf32>
    %61 = arith.mulf %60, %59 : vector<4x64xf32>
    %cst_20 = arith.constant 5.000000e-01 : f32
    %62 = vector.broadcast %cst_20 : f32 to vector<4x64xf32>
    %63 = arith.addf %61, %62 : vector<4x64xf32>
    %64 = vector.extract_strided_slice %52 {offsets = [0, 64], sizes = [4, 64], strides = [1, 1]} : vector<4x128xf32> to vector<4x64xf32>
    %cst_21 = arith.constant 5.000000e-01 : f32
    %65 = vector.broadcast %cst_21 : f32 to vector<4x64xf32>
    %66 = arith.mulf %65, %64 : vector<4x64xf32>
    %cst_22 = arith.constant 5.000000e-01 : f32
    %67 = vector.broadcast %cst_22 : f32 to vector<4x64xf32>
    %68 = arith.addf %66, %67 : vector<4x64xf32>
    %69 = arith.mulf %63, %38 : vector<4x64xf32>
    %70 = arith.mulf %57, %58 : vector<4x64xf32>
    %71 = arith.addf %69, %70 : vector<4x64xf32>
    %72 = math.tanh %71 : vector<4x64xf32>
    %73 = arith.mulf %68, %72 : vector<4x64xf32>
    %74 = arith.maximumf %41, %73 : vector<4x64xf32>
    %75 = vector.extract_strided_slice %8 {offsets = [8, 0], sizes = [4, 256], strides = [1, 1]} : vector<32x256xf32> to vector<4x256xf32>
    %76 = vector.extract_strided_slice %10 {offsets = [20, 0], sizes = [4, 256], strides = [1, 1]} : vector<32x256xf32> to vector<4x256xf32>
    %77 = arith.addf %75, %76 : vector<4x256xf32>
    %78 = arith.truncf %73 : vector<4x64xf32> to vector<4x64xbf16>
    %c0_23 = arith.constant 0 : index
    %c0_24 = arith.constant 0 : index
    %79 = vector.load %arg3[%c0_23, %c0_24] : memref<64x256xbf16, #tpu.memory_space<vmem>>, vector<64x256xbf16>
    %cst_25 = arith.constant dense<0.000000e+00> : vector<4x256xf32>
    %80 = tpu.matmul %78, %79, %cst_25 {dimension_numbers = #tpu.dot_dimension_numbers<[1], [0], [0], [1], [0, 0, 1, 1], [], []>} : vector<4x64xbf16>, vector<64x256xbf16>, vector<4x256xf32> -> vector<4x256xf32>
    %81 = arith.addf %77, %80 : vector<4x256xf32>
    %82 = vector.extract_strided_slice %81 {offsets = [0, 0], sizes = [4, 128], strides = [1, 1]} : vector<4x256xf32> to vector<4x128xf32>
    %83 = math.tanh %82 : vector<4x128xf32>
    %84 = vector.extract_strided_slice %81 {offsets = [0, 128], sizes = [4, 128], strides = [1, 1]} : vector<4x256xf32> to vector<4x128xf32>
    %85 = math.tanh %84 : vector<4x128xf32>
    %86 = vector.extract_strided_slice %83 {offsets = [0, 0], sizes = [4, 64], strides = [1, 1]} : vector<4x128xf32> to vector<4x64xf32>
    %cst_26 = arith.constant 5.000000e-01 : f32
    %87 = vector.broadcast %cst_26 : f32 to vector<4x64xf32>
    %88 = arith.mulf %87, %86 : vector<4x64xf32>
    %cst_27 = arith.constant 5.000000e-01 : f32
    %89 = vector.broadcast %cst_27 : f32 to vector<4x64xf32>
    %90 = arith.addf %88, %89 : vector<4x64xf32>
    %91 = vector.extract_strided_slice %83 {offsets = [0, 64], sizes = [4, 64], strides = [1, 1]} : vector<4x128xf32> to vector<4x64xf32>
    %92 = vector.extract_strided_slice %85 {offsets = [0, 0], sizes = [4, 64], strides = [1, 1]} : vector<4x128xf32> to vector<4x64xf32>
    %cst_28 = arith.constant 5.000000e-01 : f32
    %93 = vector.broadcast %cst_28 : f32 to vector<4x64xf32>
    %94 = arith.mulf %93, %92 : vector<4x64xf32>
    %cst_29 = arith.constant 5.000000e-01 : f32
    %95 = vector.broadcast %cst_29 : f32 to vector<4x64xf32>
    %96 = arith.addf %94, %95 : vector<4x64xf32>
    %97 = vector.extract_strided_slice %85 {offsets = [0, 64], sizes = [4, 64], strides = [1, 1]} : vector<4x128xf32> to vector<4x64xf32>
    %cst_30 = arith.constant 5.000000e-01 : f32
    %98 = vector.broadcast %cst_30 : f32 to vector<4x64xf32>
    %99 = arith.mulf %98, %97 : vector<4x64xf32>
    %cst_31 = arith.constant 5.000000e-01 : f32
    %100 = vector.broadcast %cst_31 : f32 to vector<4x64xf32>
    %101 = arith.addf %99, %100 : vector<4x64xf32>
    %102 = arith.mulf %96, %71 : vector<4x64xf32>
    %103 = arith.mulf %90, %91 : vector<4x64xf32>
    %104 = arith.addf %102, %103 : vector<4x64xf32>
    %105 = math.tanh %104 : vector<4x64xf32>
    %106 = arith.mulf %101, %105 : vector<4x64xf32>
    %107 = arith.maximumf %74, %106 : vector<4x64xf32>
    %108 = vector.extract_strided_slice %8 {offsets = [12, 0], sizes = [4, 256], strides = [1, 1]} : vector<32x256xf32> to vector<4x256xf32>
    %109 = vector.extract_strided_slice %10 {offsets = [16, 0], sizes = [4, 256], strides = [1, 1]} : vector<32x256xf32> to vector<4x256xf32>
    %110 = arith.addf %108, %109 : vector<4x256xf32>
    %111 = arith.truncf %106 : vector<4x64xf32> to vector<4x64xbf16>
    %c0_32 = arith.constant 0 : index
    %c0_33 = arith.constant 0 : index
    %112 = vector.load %arg3[%c0_32, %c0_33] : memref<64x256xbf16, #tpu.memory_space<vmem>>, vector<64x256xbf16>
    %cst_34 = arith.constant dense<0.000000e+00> : vector<4x256xf32>
    %113 = tpu.matmul %111, %112, %cst_34 {dimension_numbers = #tpu.dot_dimension_numbers<[1], [0], [0], [1], [0, 0, 1, 1], [], []>} : vector<4x64xbf16>, vector<64x256xbf16>, vector<4x256xf32> -> vector<4x256xf32>
    %114 = arith.addf %110, %113 : vector<4x256xf32>
    %115 = vector.extract_strided_slice %114 {offsets = [0, 0], sizes = [4, 128], strides = [1, 1]} : vector<4x256xf32> to vector<4x128xf32>
    %116 = math.tanh %115 : vector<4x128xf32>
    %117 = vector.extract_strided_slice %114 {offsets = [0, 128], sizes = [4, 128], strides = [1, 1]} : vector<4x256xf32> to vector<4x128xf32>
    %118 = math.tanh %117 : vector<4x128xf32>
    %119 = vector.extract_strided_slice %116 {offsets = [0, 0], sizes = [4, 64], strides = [1, 1]} : vector<4x128xf32> to vector<4x64xf32>
    %cst_35 = arith.constant 5.000000e-01 : f32
    %120 = vector.broadcast %cst_35 : f32 to vector<4x64xf32>
    %121 = arith.mulf %120, %119 : vector<4x64xf32>
    %cst_36 = arith.constant 5.000000e-01 : f32
    %122 = vector.broadcast %cst_36 : f32 to vector<4x64xf32>
    %123 = arith.addf %121, %122 : vector<4x64xf32>
    %124 = vector.extract_strided_slice %116 {offsets = [0, 64], sizes = [4, 64], strides = [1, 1]} : vector<4x128xf32> to vector<4x64xf32>
    %125 = vector.extract_strided_slice %118 {offsets = [0, 0], sizes = [4, 64], strides = [1, 1]} : vector<4x128xf32> to vector<4x64xf32>
    %cst_37 = arith.constant 5.000000e-01 : f32
    %126 = vector.broadcast %cst_37 : f32 to vector<4x64xf32>
    %127 = arith.mulf %126, %125 : vector<4x64xf32>
    %cst_38 = arith.constant 5.000000e-01 : f32
    %128 = vector.broadcast %cst_38 : f32 to vector<4x64xf32>
    %129 = arith.addf %127, %128 : vector<4x64xf32>
    %130 = vector.extract_strided_slice %118 {offsets = [0, 64], sizes = [4, 64], strides = [1, 1]} : vector<4x128xf32> to vector<4x64xf32>
    %cst_39 = arith.constant 5.000000e-01 : f32
    %131 = vector.broadcast %cst_39 : f32 to vector<4x64xf32>
    %132 = arith.mulf %131, %130 : vector<4x64xf32>
    %cst_40 = arith.constant 5.000000e-01 : f32
    %133 = vector.broadcast %cst_40 : f32 to vector<4x64xf32>
    %134 = arith.addf %132, %133 : vector<4x64xf32>
    %135 = arith.mulf %129, %104 : vector<4x64xf32>
    %136 = arith.mulf %123, %124 : vector<4x64xf32>
    %137 = arith.addf %135, %136 : vector<4x64xf32>
    %138 = math.tanh %137 : vector<4x64xf32>
    %139 = arith.mulf %134, %138 : vector<4x64xf32>
    %140 = arith.maximumf %107, %139 : vector<4x64xf32>
    %141 = vector.extract_strided_slice %8 {offsets = [16, 0], sizes = [4, 256], strides = [1, 1]} : vector<32x256xf32> to vector<4x256xf32>
    %142 = vector.extract_strided_slice %10 {offsets = [12, 0], sizes = [4, 256], strides = [1, 1]} : vector<32x256xf32> to vector<4x256xf32>
    %143 = arith.addf %141, %142 : vector<4x256xf32>
    %144 = arith.truncf %139 : vector<4x64xf32> to vector<4x64xbf16>
    %c0_41 = arith.constant 0 : index
    %c0_42 = arith.constant 0 : index
    %145 = vector.load %arg3[%c0_41, %c0_42] : memref<64x256xbf16, #tpu.memory_space<vmem>>, vector<64x256xbf16>
    %cst_43 = arith.constant dense<0.000000e+00> : vector<4x256xf32>
    %146 = tpu.matmul %144, %145, %cst_43 {dimension_numbers = #tpu.dot_dimension_numbers<[1], [0], [0], [1], [0, 0, 1, 1], [], []>} : vector<4x64xbf16>, vector<64x256xbf16>, vector<4x256xf32> -> vector<4x256xf32>
    %147 = arith.addf %143, %146 : vector<4x256xf32>
    %148 = vector.extract_strided_slice %147 {offsets = [0, 0], sizes = [4, 128], strides = [1, 1]} : vector<4x256xf32> to vector<4x128xf32>
    %149 = math.tanh %148 : vector<4x128xf32>
    %150 = vector.extract_strided_slice %147 {offsets = [0, 128], sizes = [4, 128], strides = [1, 1]} : vector<4x256xf32> to vector<4x128xf32>
    %151 = math.tanh %150 : vector<4x128xf32>
    %152 = vector.extract_strided_slice %149 {offsets = [0, 0], sizes = [4, 64], strides = [1, 1]} : vector<4x128xf32> to vector<4x64xf32>
    %cst_44 = arith.constant 5.000000e-01 : f32
    %153 = vector.broadcast %cst_44 : f32 to vector<4x64xf32>
    %154 = arith.mulf %153, %152 : vector<4x64xf32>
    %cst_45 = arith.constant 5.000000e-01 : f32
    %155 = vector.broadcast %cst_45 : f32 to vector<4x64xf32>
    %156 = arith.addf %154, %155 : vector<4x64xf32>
    %157 = vector.extract_strided_slice %149 {offsets = [0, 64], sizes = [4, 64], strides = [1, 1]} : vector<4x128xf32> to vector<4x64xf32>
    %158 = vector.extract_strided_slice %151 {offsets = [0, 0], sizes = [4, 64], strides = [1, 1]} : vector<4x128xf32> to vector<4x64xf32>
    %cst_46 = arith.constant 5.000000e-01 : f32
    %159 = vector.broadcast %cst_46 : f32 to vector<4x64xf32>
    %160 = arith.mulf %159, %158 : vector<4x64xf32>
    %cst_47 = arith.constant 5.000000e-01 : f32
    %161 = vector.broadcast %cst_47 : f32 to vector<4x64xf32>
    %162 = arith.addf %160, %161 : vector<4x64xf32>
    %163 = vector.extract_strided_slice %151 {offsets = [0, 64], sizes = [4, 64], strides = [1, 1]} : vector<4x128xf32> to vector<4x64xf32>
    %cst_48 = arith.constant 5.000000e-01 : f32
    %164 = vector.broadcast %cst_48 : f32 to vector<4x64xf32>
    %165 = arith.mulf %164, %163 : vector<4x64xf32>
    %cst_49 = arith.constant 5.000000e-01 : f32
    %166 = vector.broadcast %cst_49 : f32 to vector<4x64xf32>
    %167 = arith.addf %165, %166 : vector<4x64xf32>
    %168 = arith.mulf %162, %137 : vector<4x64xf32>
    %169 = arith.mulf %156, %157 : vector<4x64xf32>
    %170 = arith.addf %168, %169 : vector<4x64xf32>
    %171 = math.tanh %170 : vector<4x64xf32>
    %172 = arith.mulf %167, %171 : vector<4x64xf32>
    %173 = arith.maximumf %140, %172 : vector<4x64xf32>
    %174 = vector.extract_strided_slice %8 {offsets = [20, 0], sizes = [4, 256], strides = [1, 1]} : vector<32x256xf32> to vector<4x256xf32>
    %175 = vector.extract_strided_slice %10 {offsets = [8, 0], sizes = [4, 256], strides = [1, 1]} : vector<32x256xf32> to vector<4x256xf32>
    %176 = arith.addf %174, %175 : vector<4x256xf32>
    %177 = arith.truncf %172 : vector<4x64xf32> to vector<4x64xbf16>
    %c0_50 = arith.constant 0 : index
    %c0_51 = arith.constant 0 : index
    %178 = vector.load %arg3[%c0_50, %c0_51] : memref<64x256xbf16, #tpu.memory_space<vmem>>, vector<64x256xbf16>
    %cst_52 = arith.constant dense<0.000000e+00> : vector<4x256xf32>
    %179 = tpu.matmul %177, %178, %cst_52 {dimension_numbers = #tpu.dot_dimension_numbers<[1], [0], [0], [1], [0, 0, 1, 1], [], []>} : vector<4x64xbf16>, vector<64x256xbf16>, vector<4x256xf32> -> vector<4x256xf32>
    %180 = arith.addf %176, %179 : vector<4x256xf32>
    %181 = vector.extract_strided_slice %180 {offsets = [0, 0], sizes = [4, 128], strides = [1, 1]} : vector<4x256xf32> to vector<4x128xf32>
    %182 = math.tanh %181 : vector<4x128xf32>
    %183 = vector.extract_strided_slice %180 {offsets = [0, 128], sizes = [4, 128], strides = [1, 1]} : vector<4x256xf32> to vector<4x128xf32>
    %184 = math.tanh %183 : vector<4x128xf32>
    %185 = vector.extract_strided_slice %182 {offsets = [0, 0], sizes = [4, 64], strides = [1, 1]} : vector<4x128xf32> to vector<4x64xf32>
    %cst_53 = arith.constant 5.000000e-01 : f32
    %186 = vector.broadcast %cst_53 : f32 to vector<4x64xf32>
    %187 = arith.mulf %186, %185 : vector<4x64xf32>
    %cst_54 = arith.constant 5.000000e-01 : f32
    %188 = vector.broadcast %cst_54 : f32 to vector<4x64xf32>
    %189 = arith.addf %187, %188 : vector<4x64xf32>
    %190 = vector.extract_strided_slice %182 {offsets = [0, 64], sizes = [4, 64], strides = [1, 1]} : vector<4x128xf32> to vector<4x64xf32>
    %191 = vector.extract_strided_slice %184 {offsets = [0, 0], sizes = [4, 64], strides = [1, 1]} : vector<4x128xf32> to vector<4x64xf32>
    %cst_55 = arith.constant 5.000000e-01 : f32
    %192 = vector.broadcast %cst_55 : f32 to vector<4x64xf32>
    %193 = arith.mulf %192, %191 : vector<4x64xf32>
    %cst_56 = arith.constant 5.000000e-01 : f32
    %194 = vector.broadcast %cst_56 : f32 to vector<4x64xf32>
    %195 = arith.addf %193, %194 : vector<4x64xf32>
    %196 = vector.extract_strided_slice %184 {offsets = [0, 64], sizes = [4, 64], strides = [1, 1]} : vector<4x128xf32> to vector<4x64xf32>
    %cst_57 = arith.constant 5.000000e-01 : f32
    %197 = vector.broadcast %cst_57 : f32 to vector<4x64xf32>
    %198 = arith.mulf %197, %196 : vector<4x64xf32>
    %cst_58 = arith.constant 5.000000e-01 : f32
    %199 = vector.broadcast %cst_58 : f32 to vector<4x64xf32>
    %200 = arith.addf %198, %199 : vector<4x64xf32>
    %201 = arith.mulf %195, %170 : vector<4x64xf32>
    %202 = arith.mulf %189, %190 : vector<4x64xf32>
    %203 = arith.addf %201, %202 : vector<4x64xf32>
    %204 = math.tanh %203 : vector<4x64xf32>
    %205 = arith.mulf %200, %204 : vector<4x64xf32>
    %206 = arith.maximumf %173, %205 : vector<4x64xf32>
    %207 = vector.extract_strided_slice %8 {offsets = [24, 0], sizes = [4, 256], strides = [1, 1]} : vector<32x256xf32> to vector<4x256xf32>
    %208 = vector.extract_strided_slice %10 {offsets = [4, 0], sizes = [4, 256], strides = [1, 1]} : vector<32x256xf32> to vector<4x256xf32>
    %209 = arith.addf %207, %208 : vector<4x256xf32>
    %210 = arith.truncf %205 : vector<4x64xf32> to vector<4x64xbf16>
    %c0_59 = arith.constant 0 : index
    %c0_60 = arith.constant 0 : index
    %211 = vector.load %arg3[%c0_59, %c0_60] : memref<64x256xbf16, #tpu.memory_space<vmem>>, vector<64x256xbf16>
    %cst_61 = arith.constant dense<0.000000e+00> : vector<4x256xf32>
    %212 = tpu.matmul %210, %211, %cst_61 {dimension_numbers = #tpu.dot_dimension_numbers<[1], [0], [0], [1], [0, 0, 1, 1], [], []>} : vector<4x64xbf16>, vector<64x256xbf16>, vector<4x256xf32> -> vector<4x256xf32>
    %213 = arith.addf %209, %212 : vector<4x256xf32>
    %214 = vector.extract_strided_slice %213 {offsets = [0, 0], sizes = [4, 128], strides = [1, 1]} : vector<4x256xf32> to vector<4x128xf32>
    %215 = math.tanh %214 : vector<4x128xf32>
    %216 = vector.extract_strided_slice %213 {offsets = [0, 128], sizes = [4, 128], strides = [1, 1]} : vector<4x256xf32> to vector<4x128xf32>
    %217 = math.tanh %216 : vector<4x128xf32>
    %218 = vector.extract_strided_slice %215 {offsets = [0, 0], sizes = [4, 64], strides = [1, 1]} : vector<4x128xf32> to vector<4x64xf32>
    %cst_62 = arith.constant 5.000000e-01 : f32
    %219 = vector.broadcast %cst_62 : f32 to vector<4x64xf32>
    %220 = arith.mulf %219, %218 : vector<4x64xf32>
    %cst_63 = arith.constant 5.000000e-01 : f32
    %221 = vector.broadcast %cst_63 : f32 to vector<4x64xf32>
    %222 = arith.addf %220, %221 : vector<4x64xf32>
    %223 = vector.extract_strided_slice %215 {offsets = [0, 64], sizes = [4, 64], strides = [1, 1]} : vector<4x128xf32> to vector<4x64xf32>
    %224 = vector.extract_strided_slice %217 {offsets = [0, 0], sizes = [4, 64], strides = [1, 1]} : vector<4x128xf32> to vector<4x64xf32>
    %cst_64 = arith.constant 5.000000e-01 : f32
    %225 = vector.broadcast %cst_64 : f32 to vector<4x64xf32>
    %226 = arith.mulf %225, %224 : vector<4x64xf32>
    %cst_65 = arith.constant 5.000000e-01 : f32
    %227 = vector.broadcast %cst_65 : f32 to vector<4x64xf32>
    %228 = arith.addf %226, %227 : vector<4x64xf32>
    %229 = vector.extract_strided_slice %217 {offsets = [0, 64], sizes = [4, 64], strides = [1, 1]} : vector<4x128xf32> to vector<4x64xf32>
    %cst_66 = arith.constant 5.000000e-01 : f32
    %230 = vector.broadcast %cst_66 : f32 to vector<4x64xf32>
    %231 = arith.mulf %230, %229 : vector<4x64xf32>
    %cst_67 = arith.constant 5.000000e-01 : f32
    %232 = vector.broadcast %cst_67 : f32 to vector<4x64xf32>
    %233 = arith.addf %231, %232 : vector<4x64xf32>
    %234 = arith.mulf %228, %203 : vector<4x64xf32>
    %235 = arith.mulf %222, %223 : vector<4x64xf32>
    %236 = arith.addf %234, %235 : vector<4x64xf32>
    %237 = math.tanh %236 : vector<4x64xf32>
    %238 = arith.mulf %233, %237 : vector<4x64xf32>
    %239 = arith.maximumf %206, %238 : vector<4x64xf32>
    %240 = vector.extract_strided_slice %8 {offsets = [28, 0], sizes = [4, 256], strides = [1, 1]} : vector<32x256xf32> to vector<4x256xf32>
    %241 = vector.extract_strided_slice %10 {offsets = [0, 0], sizes = [4, 256], strides = [1, 1]} : vector<32x256xf32> to vector<4x256xf32>
    %242 = arith.addf %240, %241 : vector<4x256xf32>
    %243 = arith.truncf %238 : vector<4x64xf32> to vector<4x64xbf16>
    %c0_68 = arith.constant 0 : index
    %c0_69 = arith.constant 0 : index
    %244 = vector.load %arg3[%c0_68, %c0_69] : memref<64x256xbf16, #tpu.memory_space<vmem>>, vector<64x256xbf16>
    %cst_70 = arith.constant dense<0.000000e+00> : vector<4x256xf32>
    %245 = tpu.matmul %243, %244, %cst_70 {dimension_numbers = #tpu.dot_dimension_numbers<[1], [0], [0], [1], [0, 0, 1, 1], [], []>} : vector<4x64xbf16>, vector<64x256xbf16>, vector<4x256xf32> -> vector<4x256xf32>
    %246 = arith.addf %242, %245 : vector<4x256xf32>
    %247 = vector.extract_strided_slice %246 {offsets = [0, 0], sizes = [4, 128], strides = [1, 1]} : vector<4x256xf32> to vector<4x128xf32>
    %248 = math.tanh %247 : vector<4x128xf32>
    %249 = vector.extract_strided_slice %246 {offsets = [0, 128], sizes = [4, 128], strides = [1, 1]} : vector<4x256xf32> to vector<4x128xf32>
    %250 = math.tanh %249 : vector<4x128xf32>
    %251 = vector.extract_strided_slice %248 {offsets = [0, 0], sizes = [4, 64], strides = [1, 1]} : vector<4x128xf32> to vector<4x64xf32>
    %cst_71 = arith.constant 5.000000e-01 : f32
    %252 = vector.broadcast %cst_71 : f32 to vector<4x64xf32>
    %253 = arith.mulf %252, %251 : vector<4x64xf32>
    %cst_72 = arith.constant 5.000000e-01 : f32
    %254 = vector.broadcast %cst_72 : f32 to vector<4x64xf32>
    %255 = arith.addf %253, %254 : vector<4x64xf32>
    %256 = vector.extract_strided_slice %248 {offsets = [0, 64], sizes = [4, 64], strides = [1, 1]} : vector<4x128xf32> to vector<4x64xf32>
    %257 = vector.extract_strided_slice %250 {offsets = [0, 0], sizes = [4, 64], strides = [1, 1]} : vector<4x128xf32> to vector<4x64xf32>
    %cst_73 = arith.constant 5.000000e-01 : f32
    %258 = vector.broadcast %cst_73 : f32 to vector<4x64xf32>
    %259 = arith.mulf %258, %257 : vector<4x64xf32>
    %cst_74 = arith.constant 5.000000e-01 : f32
    %260 = vector.broadcast %cst_74 : f32 to vector<4x64xf32>
    %261 = arith.addf %259, %260 : vector<4x64xf32>
    %262 = vector.extract_strided_slice %250 {offsets = [0, 64], sizes = [4, 64], strides = [1, 1]} : vector<4x128xf32> to vector<4x64xf32>
    %cst_75 = arith.constant 5.000000e-01 : f32
    %263 = vector.broadcast %cst_75 : f32 to vector<4x64xf32>
    %264 = arith.mulf %263, %262 : vector<4x64xf32>
    %cst_76 = arith.constant 5.000000e-01 : f32
    %265 = vector.broadcast %cst_76 : f32 to vector<4x64xf32>
    %266 = arith.addf %264, %265 : vector<4x64xf32>
    %267 = arith.mulf %261, %236 : vector<4x64xf32>
    %268 = arith.mulf %255, %256 : vector<4x64xf32>
    %269 = arith.addf %267, %268 : vector<4x64xf32>
    %270 = math.tanh %269 : vector<4x64xf32>
    %271 = arith.mulf %266, %270 : vector<4x64xf32>
    %272 = arith.maximumf %239, %271 : vector<4x64xf32>
    %273 = vector.extract_strided_slice %272 {offsets = [0, 0], sizes = [2, 64], strides = [1, 1]} : vector<4x64xf32> to vector<2x64xf32>
    %274 = vector.extract_strided_slice %272 {offsets = [2, 0], sizes = [2, 64], strides = [1, 1]} : vector<4x64xf32> to vector<2x64xf32>
    %275 = arith.mulf %273, %274 : vector<2x64xf32>
    %cst_77 = arith.constant dense<0.000000e+00> : vector<2xf32>
    %276 = vector.multi_reduction <add>, %275, %cst_77 [1] : vector<2x64xf32> to vector<2xf32>
    %277 = vector.shape_cast %276 : vector<2xf32> to vector<2x1xf32>
    %278 = arith.mulf %273, %273 : vector<2x64xf32>
    %cst_78 = arith.constant dense<0.000000e+00> : vector<2xf32>
    %279 = vector.multi_reduction <add>, %278, %cst_78 [1] : vector<2x64xf32> to vector<2xf32>
    %280 = vector.shape_cast %279 : vector<2xf32> to vector<2x1xf32>
    %281 = math.sqrt %280 : vector<2x1xf32>
    %282 = arith.mulf %274, %274 : vector<2x64xf32>
    %cst_79 = arith.constant dense<0.000000e+00> : vector<2xf32>
    %283 = vector.multi_reduction <add>, %282, %cst_79 [1] : vector<2x64xf32> to vector<2xf32>
    %284 = vector.shape_cast %283 : vector<2xf32> to vector<2x1xf32>
    %285 = math.sqrt %284 : vector<2x1xf32>
    %cst_80 = arith.constant 9.99999993E-9 : f32
    %286 = vector.broadcast %cst_80 : f32 to vector<2x1xf32>
    %287 = arith.maximumf %281, %286 : vector<2x1xf32>
    %cst_81 = arith.constant 9.99999993E-9 : f32
    %288 = vector.broadcast %cst_81 : f32 to vector<2x1xf32>
    %289 = arith.maximumf %285, %288 : vector<2x1xf32>
    %290 = arith.mulf %287, %289 : vector<2x1xf32>
    %291 = arith.divf %277, %290 : vector<2x1xf32>
    %c0_82 = arith.constant 0 : index
    %c0_83 = arith.constant 0 : index
    %292 = vector.load %arg4[%c0_82, %c0_83] : memref<2x1xf32, #tpu.memory_space<vmem>>, vector<2x1xf32>
    tpu.vector_store %arg4[%c0_82, %c0_83], %291 {strides = array<i32>} : memref<2x1xf32, #tpu.memory_space<vmem>>, vector<2x1xf32>,
    return
  }
}

</mosaic_0001>

<llo_original>
// kernel: qa_lstm_forward.1
$region0: #{qa_lstm_forward.1}
  #allocation0 [shape = 'u32[]', space=smem, size = 0x4, offset = 0x4, fixed_abs, tag = 'smem constant byte address 0x4 - core index']
  #allocation1 [shape = 'u32[72,128]{1,0:T(1,128)}', space=vmem, size = 0x9000, scoped, tag = 'internal scratch']
  %s0 = inlined_call_operand.vmem [shape: s32[32,1], index: 0, kind: input, shape index: {}]
  %s1 = inlined_call_operand.hbm [shape: bf16[64,256], index: 1, kind: input, shape index: {}]
  %s2 = inlined_call_operand.hbm [shape: bf16[64,256], index: 2, kind: input, shape index: {}]
  %s3 = inlined_call_operand.hbm [shape: bf16[64,256], index: 3, kind: input, shape index: {}]
  %s4 = inlined_call_operand.vmem [shape: f32[2,1], index: 4, kind: output, shape index: {}]
  %s5 = sld [smem:[#allocation0]]
  $region38: #{qa_lstm_forward.1} parent=0
    _
  %s7 = ssub.s32 1, %s5
  %s8 = scalar_select 0, %s7, %s5
  $region1: #{qa_lstm_forward.1} parent=0
    #allocation2 [shape = 'u8[32768]{0}', space=vmem, size = 0x8000, scoped, tag = 'input window, operand 1, single buffered']
    #allocation3 [shape = 's32[1]{0}', space=sflag, size = 0x4, scoped, tag = 'scoped memory for qa_lstm_forward.1']
    #allocation4 [shape = 'u8[32768]{0}', space=vmem, size = 0x8000, scoped, tag = 'input window, operand 2, single buffered']
    #allocation5 [shape = 's32[1]{0}', space=sflag, size = 0x4, scoped, tag = 'scoped memory for qa_lstm_forward.1']
    #allocation6 [shape = 'u8[32768]{0}', space=vmem, size = 0x8000, scoped, tag = 'input window, operand 3, single buffered']
    %9 = vsyncpa [#allocation3], 0
    %10 = vsyncpa [#allocation5], 0
    // Predicated region
    $region2: #{qa_lstm_forward.1} parent=1 // pred_check
      _
    $region3: #{qa_lstm_forward.1} parent=1 // pred_check_branch
      %12 = sbr.rel (0) target = $region5
    $region4: #{qa_lstm_forward.1} parent=1 // pred_region
      _
    $region5: #{qa_lstm_forward.1} parent=1 // pred_fallthru
      _
    // Predicated region
    $region6: #{qa_lstm_forward.1} parent=1 // pred_check
      _
    $region7: #{qa_lstm_forward.1} parent=1 // pred_check_branch
      %14 = sbr.rel (0) target = $region9
    $region8: #{qa_lstm_forward.1} parent=1 // pred_region
      %16 = vsyncadd [#allocation3], 0
      %s17 = sshll.u32 %s1, 4
      %s18 = int_to_ptr.hbm [resolvable:$true] %s17
      %s19 = sshll.u32 [#allocation2], 4
      %s20 = int_to_ptr.vmem [resolvable:$true] %s19
      %25 = dma.hbm_to_vmem [thread:$0]  %s18, 1024, %s20, [#allocation3], 128, 128, 8
    $region9: #{qa_lstm_forward.1} parent=1 // pred_fallthru
      _
    // Predicated region
    $region10: #{qa_lstm_forward.1} parent=1 // pred_check
      _
    $region11: #{qa_lstm_forward.1} parent=1 // pred_check_branch
      %27 = sbr.rel (0) target = $region13
    $region12: #{qa_lstm_forward.1} parent=1 // pred_region
      %29 = vsyncadd [#allocation5], 0
      %s30 = sshll.u32 %s2, 4
      %s31 = int_to_ptr.hbm [resolvable:$true] %s30
      %s32 = sshll.u32 [#allocation4], 4
      %s33 = int_to_ptr.vmem [resolvable:$true] %s32
      %38 = dma.hbm_to_vmem [thread:$0]  %s31, 1024, %s33, [#allocation5], 128, 128, 8
    $region13: #{qa_lstm_forward.1} parent=1 // pred_fallthru
      _
    // Predicated region
    $region14: #{qa_lstm_forward.1} parent=1 // pred_check
      _
    $region15: #{qa_lstm_forward.1} parent=1 // pred_check_branch
      %40 = sbr.rel (0) target = $region17
    $region16: #{qa_lstm_forward.1} parent=1 // pred_region
      %42 = vsyncadd [#allocation5], 0
      %s43 = sshll.u32 %s3, 4
      %s44 = int_to_ptr.hbm [resolvable:$true] %s43
      %s45 = sshll.u32 [#allocation6], 4
      %s46 = int_to_ptr.vmem [resolvable:$true] %s45
      %51 = dma.hbm_to_vmem [thread:$0]  %s44, 1024, %s46, [#allocation5], 128, 128, 8
    $region17: #{qa_lstm_forward.1} parent=1 // pred_fallthru
      _
    // Predicated region
    $region18: #{qa_lstm_forward.1} parent=1 // pred_check
      _
    $region19: #{qa_lstm_forward.1} parent=1 // pred_check_branch
      %53 = sbr.rel (0) target = $region21
    $region20: #{qa_lstm_forward.1} parent=1 // pred_region
      %55 = dma.done [#allocation3], 1024
    $region21: #{qa_lstm_forward.1} parent=1 // pred_fallthru
      _
    // Predicated region
    $region22: #{qa_lstm_forward.1} parent=1 // pred_check
      _
    $region23: #{qa_lstm_forward.1} parent=1 // pred_check_branch
      %57 = sbr.rel (0) target = $region25
    $region24: #{qa_lstm_forward.1} parent=1 // pred_region
      %59 = dma.done [#allocation5], 1024
    $region25: #{qa_lstm_forward.1} parent=1 // pred_fallthru
      _
    // Predicated region
    $region26: #{qa_lstm_forward.1} parent=1 // pred_check
      _
    $region27: #{qa_lstm_forward.1} parent=1 // pred_check_branch
      %61 = sbr.rel (0) target = $region29
    $region28: #{qa_lstm_forward.1} parent=1 // pred_region
      %63 = dma.done [#allocation5], 1024
    $region29: #{qa_lstm_forward.1} parent=1 // pred_fallthru
      _
    %v65 = vld [vmem:[%s0] sm:$0xff]
    %v66 = vld [vmem:[%s0 + $0x8] sm:$0xff]
    %v67 = vld [vmem:[%s0 + $0x10] sm:$0xff]
    %v68 = vld [vmem:[%s0 + $0x18] sm:$0xff]
    %v69 = vlaneseq
    %v70 = vand.u32 %v69, 127
    %71 = vset.pattern.permute.xlu0 0
    %72 = vperm.xlu0 %71, %v65
    %v73 = vpop.permute.xlu0 %72
    %74 = vset.pattern.permute.xlu0 0
    %75 = vperm.xlu0 %74, %v66
    %v76 = vpop.permute.xlu0 %75
    %77 = vset.pattern.permute.xlu0 0
    %78 = vperm.xlu0 %77, %v67
    %v79 = vpop.permute.xlu0 %78
    %80 = vset.pattern.permute.xlu0 0
    %81 = vperm.xlu0 %80, %v68
    %v82 = vpop.permute.xlu0 %81
    %vm83 = vcmp.eq.s32.totalorder %v73, %v70
    %vm84 = vcmp.eq.s32.totalorder %v76, %v70
    %vm85 = vcmp.eq.s32.totalorder %v79, %v70
    %vm86 = vcmp.eq.s32.totalorder %v82, %v70
    %v87 = vsel %vm83, 1, 0
    %v88 = vsel %vm84, 1, 0
    %v89 = vsel %vm85, 1, 0
    %v90 = vsel %vm86, 1, 0
    %v91 = vcvt.s32.f32 %v87
    %v92 = vcvt.s32.f32 %v88
    %v93 = vcvt.s32.f32 %v89
    %v94 = vcvt.s32.f32 %v90
    %v95 = vpack.c.bf16 %v92, %v91
    %v96 = vpack.c.bf16 %v94, %v93
    %v97 = vld [vmem:[#allocation2] sm:$0xff]
    %v98 = vld [vmem:[#allocation2 + $0x8] sm:$0xff]
    %v99 = vld [vmem:[#allocation2 + $0x10] sm:$0xff]
    %v100 = vld [vmem:[#allocation2 + $0x18] sm:$0xff]
    %v101 = vld [vmem:[#allocation2 + $0x20] sm:$0xff]
    %v102 = vld [vmem:[#allocation2 + $0x28] sm:$0xff]
    %v103 = vld [vmem:[#allocation2 + $0x30] sm:$0xff]
    %v104 = vld [vmem:[#allocation2 + $0x38] sm:$0xff]
    %v113 = vunpack.c.l.b16 %v97
    %v114 = vunpack.c.h.b16 %v97
    %v115 = vunpack.c.l.b16 %v98
    %v116 = vunpack.c.h.b16 %v98
    %v117 = vunpack.c.l.b16 %v99
    %v118 = vunpack.c.h.b16 %v99
    %v119 = vunpack.c.l.b16 %v100
    %v120 = vunpack.c.h.b16 %v100
    %v121 = vunpack.c.l.b16 %v101
    %v122 = vunpack.c.h.b16 %v101
    %v123 = vunpack.c.l.b16 %v102
    %v124 = vunpack.c.h.b16 %v102
    %v125 = vunpack.c.l.b16 %v103
    %v126 = vunpack.c.h.b16 %v103
    %v127 = vunpack.c.l.b16 %v104
    %v128 = vunpack.c.h.b16 %v104
    %v129 = vpack.c.b16 %v115, %v113
    %v130 = vpack.c.b16 %v116, %v114
    %v131 = vpack.c.b16 %v119, %v117
    %v132 = vpack.c.b16 %v120, %v118
    %v133 = vpack.c.b16 %v123, %v121
    %v134 = vpack.c.b16 %v124, %v122
    %v135 = vpack.c.b16 %v127, %v125
    %v136 = vpack.c.b16 %v128, %v126
    %vm145 = vcmask 523264
    %v147 = vsel %vm145, %v95, 0
    %v150 = vsel %vm145, %v96, 0
    %152 = vmatpush.bf16.msra.mxu0 0
    %153 = vmatpush.bf16.msra.mxu0 0
    %154 = vmatpush.bf16.msra.mxu0 0
    %155 = vmatpush.bf16.msra.mxu0 0
    %156 = vmatpush.bf16.msra.mxu0 %v135
    %157 = vmatpush.bf16.msra.mxu0 %v133
    %158 = vmatpush.bf16.msra.mxu0 %v131
    %159 = vmatpush.bf16.msra.mxu0 %v129
    %160 = vmatmul.bf16.gmra.mxu0 %v147
    %v161 = vpop.f32.mrf.mxu0
    %v162 = vadd.f32 0.0, %v161
    %v163 = vpop.f32.mrf.mxu0
    %v164 = vadd.f32 0.0, %v163
    %165 = vmatmul.bf16.gmra.mxu0 %v150
    %v166 = vpop.f32.mrf.mxu0
    %v167 = vadd.f32 0.0, %v166
    %v168 = vpop.f32.mrf.mxu0
    %v169 = vadd.f32 0.0, %v168
    %170 = vdwg.mxu0
    %171 = vmatpush.bf16.msra.mxu0 0
    %172 = vmatpush.bf16.msra.mxu0 0
    %173 = vmatpush.bf16.msra.mxu0 0
    %174 = vmatpush.bf16.msra.mxu0 0
    %175 = vmatpush.bf16.msra.mxu0 %v136
    %176 = vmatpush.bf16.msra.mxu0 %v134
    %177 = vmatpush.bf16.msra.mxu0 %v132
    %178 = vmatpush.bf16.msra.mxu0 %v130
    %179 = vmatmul.bf16.gmra.mxu0 %v147
    %v180 = vpop.f32.mrf.mxu0
    %v181 = vadd.f32 0.0, %v180
    %v182 = vpop.f32.mrf.mxu0
    %v183 = vadd.f32 0.0, %v182
    %184 = vmatmul.bf16.gmra.mxu0 %v150
    %v185 = vpop.f32.mrf.mxu0
    %v186 = vadd.f32 0.0, %v185
    %v187 = vpop.f32.mrf.mxu0
    %v188 = vadd.f32 0.0, %v187
    %189 = vdwg.mxu0
    %v190 = vld [vmem:[#allocation4] sm:$0xff]
    %v191 = vld [vmem:[#allocation4 + $0x8] sm:$0xff]
    %v192 = vld [vmem:[#allocation4 + $0x10] sm:$0xff]
    %v193 = vld [vmem:[#allocation4 + $0x18] sm:$0xff]
    %v194 = vld [vmem:[#allocation4 + $0x20] sm:$0xff]
    %v195 = vld [vmem:[#allocation4 + $0x28] sm:$0xff]
    %v196 = vld [vmem:[#allocation4 + $0x30] sm:$0xff]
    %v197 = vld [vmem:[#allocation4 + $0x38] sm:$0xff]
    %v206 = vunpack.c.l.b16 %v190
    %v207 = vunpack.c.h.b16 %v190
    %v208 = vunpack.c.l.b16 %v191
    %v209 = vunpack.c.h.b16 %v191
    %v210 = vunpack.c.l.b16 %v192
    %v211 = vunpack.c.h.b16 %v192
    %v212 = vunpack.c.l.b16 %v193
    %v213 = vunpack.c.h.b16 %v193
    %v214 = vunpack.c.l.b16 %v194
    %v215 = vunpack.c.h.b16 %v194
    %v216 = vunpack.c.l.b16 %v195
    %v217 = vunpack.c.h.b16 %v195
    %v218 = vunpack.c.l.b16 %v196
    %v219 = vunpack.c.h.b16 %v196
    %v220 = vunpack.c.l.b16 %v197
    %v221 = vunpack.c.h.b16 %v197
    %v222 = vpack.c.b16 %v208, %v206
    %v223 = vpack.c.b16 %v209, %v207
    %v224 = vpack.c.b16 %v212, %v210
    %v225 = vpack.c.b16 %v213, %v211
    %v226 = vpack.c.b16 %v216, %v214
    %v227 = vpack.c.b16 %v217, %v215
    %v228 = vpack.c.b16 %v220, %v218
    %v229 = vpack.c.b16 %v221, %v219
    %238 = vmatpush.bf16.msra.mxu0 0
    %239 = vmatpush.bf16.msra.mxu0 0
    %240 = vmatpush.bf16.msra.mxu0 0
    %241 = vmatpush.bf16.msra.mxu0 0
    %242 = vmatpush.bf16.msra.mxu0 %v228
    %243 = vmatpush.bf16.msra.mxu0 %v226
    %244 = vmatpush.bf16.msra.mxu0 %v224
    %245 = vmatpush.bf16.msra.mxu0 %v222
    %246 = vmatmul.bf16.gmra.mxu0 %v147
    %v247 = vpop.f32.mrf.mxu0
    %v248 = vadd.f32 0.0, %v247
    %v249 = vpop.f32.mrf.mxu0
    %v250 = vadd.f32 0.0, %v249
    %251 = vmatmul.bf16.gmra.mxu0 %v150
    %v252 = vpop.f32.mrf.mxu0
    %v253 = vadd.f32 0.0, %v252
    %v254 = vpop.f32.mrf.mxu0
    %v255 = vadd.f32 0.0, %v254
    %256 = vdwg.mxu0
    %257 = vmatpush.bf16.msra.mxu0 0
    %258 = vmatpush.bf16.msra.mxu0 0
    %259 = vmatpush.bf16.msra.mxu0 0
    %260 = vmatpush.bf16.msra.mxu0 0
    %261 = vmatpush.bf16.msra.mxu0 %v229
    %262 = vmatpush.bf16.msra.mxu0 %v227
    %263 = vmatpush.bf16.msra.mxu0 %v225
    %264 = vmatpush.bf16.msra.mxu0 %v223
    %265 = vmatmul.bf16.gmra.mxu0 %v147
    %v266 = vpop.f32.mrf.mxu0
    %v267 = vadd.f32 0.0, %v266
    %v268 = vpop.f32.mrf.mxu0
    %v269 = vadd.f32 0.0, %v268
    %270 = vmatmul.bf16.gmra.mxu0 %v150
    %v271 = vpop.f32.mrf.mxu0
    %v272 = vadd.f32 0.0, %v271
    %v273 = vpop.f32.mrf.mxu0
    %v274 = vadd.f32 0.0, %v273
    %275 = vdwg.mxu0
    %v278 = vrot.slane %v255, 4
    %v279 = vrot.slane %v274, 4
    %v282 = vadd.f32 %v162, %v278
    %v283 = vadd.f32 %v181, %v279
    %v284 = vtanh.pop %v282
    %v285 = vtanh.pop %v283
    %v286 = vmul.f32 %v284, 0.5
    %v287 = vadd.f32 %v286, 0.5
    %v288 = vmul.f32 %v285, 0.5
    %v289 = vadd.f32 %v288, 0.5
    %v290 = vmul.f32 %v289, 0.0
    %292 = vrot.lane.b32.xlu0 %v284, 64
    %v293 = vpop.permute.xlu0 %292
    %v295 = vmul.f32 %v287, %v293
    %v296 = vadd.f32 %v290, %v295
    %v297 = vtanh.pop %v296
    %299 = vrot.lane.b32.xlu0 %v297, 64
    %v300 = vpop.permute.xlu0 %299
    %v302 = vmul.f32 %v289, %v300
    %v303 = vpack.c.bf16 %v302, %v302
    %v304 = vld [vmem:[#allocation6] sm:$0xff]
    %v305 = vld [vmem:[#allocation6 + $0x8] sm:$0xff]
    %v306 = vld [vmem:[#allocation6 + $0x10] sm:$0xff]
    %v307 = vld [vmem:[#allocation6 + $0x18] sm:$0xff]
    %v308 = vld [vmem:[#allocation6 + $0x20] sm:$0xff]
    %v309 = vld [vmem:[#allocation6 + $0x28] sm:$0xff]
    %v310 = vld [vmem:[#allocation6 + $0x30] sm:$0xff]
    %v311 = vld [vmem:[#allocation6 + $0x38] sm:$0xff]
    %313 = vrot.lane.b32.xlu0 %v303, 64
    %v314 = vpop.permute.xlu0 %313
    %v323 = vunpack.c.l.b16 %v304
    %v324 = vunpack.c.h.b16 %v304
    %v325 = vunpack.c.l.b16 %v305
    %v326 = vunpack.c.h.b16 %v305
    %v327 = vunpack.c.l.b16 %v306
    %v328 = vunpack.c.h.b16 %v306
    %v329 = vunpack.c.l.b16 %v307
    %v330 = vunpack.c.h.b16 %v307
    %v331 = vunpack.c.l.b16 %v308
    %v332 = vunpack.c.h.b16 %v308
    %v333 = vunpack.c.l.b16 %v309
    %v334 = vunpack.c.h.b16 %v309
    %v335 = vunpack.c.l.b16 %v310
    %v336 = vunpack.c.h.b16 %v310
    %v337 = vunpack.c.l.b16 %v311
    %v338 = vunpack.c.h.b16 %v311
    %v339 = vpack.c.b16 %v325, %v323
    %v340 = vpack.c.b16 %v326, %v324
    %v341 = vpack.c.b16 %v329, %v327
    %v342 = vpack.c.b16 %v330, %v328
    %v343 = vpack.c.b16 %v333, %v331
    %v344 = vpack.c.b16 %v334, %v332
    %v345 = vpack.c.b16 %v337, %v335
    %v346 = vpack.c.b16 %v338, %v336
    %v356 = vsel %vm145, %v314, 0
    %358 = vmatpush.bf16.msra.mxu0 0
    %359 = vmatpush.bf16.msra.mxu0 0
    %360 = vmatpush.bf16.msra.mxu0 0
    %361 = vmatpush.bf16.msra.mxu0 0
    %362 = vmatpush.bf16.msra.mxu0 %v345
    %363 = vmatpush.bf16.msra.mxu0 %v343
    %364 = vmatpush.bf16.msra.mxu0 %v341
    %365 = vmatpush.bf16.msra.mxu0 %v339
    %366 = vmatmul.bf16.gmra.mxu0 %v356
    %v367 = vpop.f32.mrf.mxu0
    %v368 = vadd.f32 0.0, %v367
    %v369 = vpop.f32.mrf.mxu0
    %370 = vdwg.mxu0
    %371 = vmatpush.bf16.msra.mxu0 0
    %372 = vmatpush.bf16.msra.mxu0 0
    %373 = vmatpush.bf16.msra.mxu0 0
    %374 = vmatpush.bf16.msra.mxu0 0
    %375 = vmatpush.bf16.msra.mxu0 %v346
    %376 = vmatpush.bf16.msra.mxu0 %v344
    %377 = vmatpush.bf16.msra.mxu0 %v342
    %378 = vmatpush.bf16.msra.mxu0 %v340
    %379 = vmatmul.bf16.gmra.mxu0 %v356
    %v380 = vpop.f32.mrf.mxu0
    %v381 = vadd.f32 0.0, %v380
    %v382 = vpop.f32.mrf.mxu0
    %383 = vdwg.mxu0
    %v386 = vrot.slane %v368, 4
    %v387 = vrot.slane %v381, 4
    %v390 = vadd.f32 %v282, %v386
    %v391 = vadd.f32 %v283, %v387
    %v392 = vtanh.pop %v390
    %v393 = vtanh.pop %v391
    %v394 = vmul.f32 %v392, 0.5
    %v395 = vadd.f32 %v394, 0.5
    %v396 = vmul.f32 %v393, 0.5
    %v397 = vadd.f32 %v396, 0.5
    %v399 = vrot.slane %v296, 4
    %v401 = vmul.f32 %v397, %v399
    %403 = vrot.lane.b32.xlu0 %v392, 64
    %v404 = vpop.permute.xlu0 %403
    %v406 = vmul.f32 %v395, %v404
    %v407 = vadd.f32 %v401, %v406
    %v408 = vtanh.pop %v407
    %410 = vrot.lane.b32.xlu0 %v408, 64
    %v411 = vpop.permute.xlu0 %410
    %v413 = vmul.f32 %v397, %v411
    %v415 = vrot.slane %v413, 4
    %v417 = vmax.f32 %v302, %v415
    %v420 = vrot.slane %v253, 4
    %v421 = vrot.slane %v272, 4
    %v424 = vadd.f32 %v164, %v420
    %v425 = vadd.f32 %v183, %v421
    %v426 = vpack.c.bf16 %v413, %v413
    %v428 = vrot.slane %v426, 2
    %429 = vrot.lane.b32.xlu0 %v428, 64
    %v430 = vpop.permute.xlu0 %429
    %v432 = vsel %vm145, %v430, 0
    %434 = vmatpush.bf16.msra.mxu0 0
    %435 = vmatpush.bf16.msra.mxu0 0
    %436 = vmatpush.bf16.msra.mxu0 0
    %437 = vmatpush.bf16.msra.mxu0 0
    %438 = vmatpush.bf16.msra.mxu0 %v345
    %439 = vmatpush.bf16.msra.mxu0 %v343
    %440 = vmatpush.bf16.msra.mxu0 %v341
    %441 = vmatpush.bf16.msra.mxu0 %v339
    %442 = vmatmul.bf16.gmra.mxu0 %v432
    %v443 = vpop.f32.mrf.mxu0
    %v444 = vadd.f32 0.0, %v443
    %v445 = vpop.f32.mrf.mxu0
    %446 = vdwg.mxu0
    %447 = vmatpush.bf16.msra.mxu0 0
    %448 = vmatpush.bf16.msra.mxu0 0
    %449 = vmatpush.bf16.msra.mxu0 0
    %450 = vmatpush.bf16.msra.mxu0 0
    %451 = vmatpush.bf16.msra.mxu0 %v346
    %452 = vmatpush.bf16.msra.mxu0 %v344
    %453 = vmatpush.bf16.msra.mxu0 %v342
    %454 = vmatpush.bf16.msra.mxu0 %v340
    %455 = vmatmul.bf16.gmra.mxu0 %v432
    %v456 = vpop.f32.mrf.mxu0
    %v457 = vadd.f32 0.0, %v456
    %v458 = vpop.f32.mrf.mxu0
    %459 = vdwg.mxu0
    %v460 = vadd.f32 %v424, %v444
    %v461 = vadd.f32 %v425, %v457
    %v462 = vtanh.pop %v460
    %v463 = vtanh.pop %v461
    %v464 = vmul.f32 %v462, 0.5
    %v465 = vadd.f32 %v464, 0.5
    %v466 = vmul.f32 %v463, 0.5
    %v467 = vadd.f32 %v466, 0.5
    %v469 = vrot.slane %v407, 4
    %v471 = vmul.f32 %v467, %v469
    %473 = vrot.lane.b32.xlu0 %v462, 64
    %v474 = vpop.permute.xlu0 %473
    %v476 = vmul.f32 %v465, %v474
    %v477 = vadd.f32 %v471, %v476
    %v478 = vtanh.pop %v477
    %480 = vrot.lane.b32.xlu0 %v478, 64
    %v481 = vpop.permute.xlu0 %480
    %v483 = vmul.f32 %v467, %v481
    %v484 = vmax.f32 %v417, %v483
    %v485 = vpack.c.bf16 %v483, %v483
    %487 = vrot.lane.b32.xlu0 %v485, 64
    %v488 = vpop.permute.xlu0 %487
    %v490 = vsel %vm145, %v488, 0
    %492 = vmatpush.bf16.msra.mxu0 0
    %493 = vmatpush.bf16.msra.mxu0 0
    %494 = vmatpush.bf16.msra.mxu0 0
    %495 = vmatpush.bf16.msra.mxu0 0
    %496 = vmatpush.bf16.msra.mxu0 %v345
    %497 = vmatpush.bf16.msra.mxu0 %v343
    %498 = vmatpush.bf16.msra.mxu0 %v341
    %499 = vmatpush.bf16.msra.mxu0 %v339
    %500 = vmatmul.bf16.gmra.mxu0 %v490
    %v501 = vpop.f32.mrf.mxu0
    %v502 = vadd.f32 0.0, %v501
    %v503 = vpop.f32.mrf.mxu0
    %504 = vdwg.mxu0
    %505 = vmatpush.bf16.msra.mxu0 0
    %506 = vmatpush.bf16.msra.mxu0 0
    %507 = vmatpush.bf16.msra.mxu0 0
    %508 = vmatpush.bf16.msra.mxu0 0
    %509 = vmatpush.bf16.msra.mxu0 %v346
    %510 = vmatpush.bf16.msra.mxu0 %v344
    %511 = vmatpush.bf16.msra.mxu0 %v342
    %512 = vmatpush.bf16.msra.mxu0 %v340
    %513 = vmatmul.bf16.gmra.mxu0 %v490
    %v514 = vpop.f32.mrf.mxu0
    %v515 = vadd.f32 0.0, %v514
    %v516 = vpop.f32.mrf.mxu0
    %517 = vdwg.mxu0
    %v520 = vrot.slane %v502, 4
    %v521 = vrot.slane %v515, 4
    %v524 = vadd.f32 %v424, %v520
    %v525 = vadd.f32 %v425, %v521
    %v526 = vtanh.pop %v524
    %v527 = vtanh.pop %v525
    %v528 = vmul.f32 %v526, 0.5
    %v529 = vadd.f32 %v528, 0.5
    %v530 = vmul.f32 %v527, 0.5
    %v531 = vadd.f32 %v530, 0.5
    %v533 = vrot.slane %v477, 4
    %v535 = vmul.f32 %v531, %v533
    %537 = vrot.lane.b32.xlu0 %v526, 64
    %v538 = vpop.permute.xlu0 %537
    %v540 = vmul.f32 %v529, %v538
    %v541 = vadd.f32 %v535, %v540
    %v542 = vtanh.pop %v541
    %544 = vrot.lane.b32.xlu0 %v542, 64
    %v545 = vpop.permute.xlu0 %544
    %v547 = vmul.f32 %v531, %v545
    %v549 = vrot.slane %v547, 4
    %v551 = vmax.f32 %v484, %v549
    %v554 = vrot.slane %v250, 4
    %v555 = vrot.slane %v269, 4
    %v558 = vadd.f32 %v167, %v554
    %v559 = vadd.f32 %v186, %v555
    %v560 = vpack.c.bf16 %v547, %v547
    %v562 = vrot.slane %v560, 2
    %563 = vrot.lane.b32.xlu0 %v562, 64
    %v564 = vpop.permute.xlu0 %563
    %v566 = vsel %vm145, %v564, 0
    %568 = vmatpush.bf16.msra.mxu0 0
    %569 = vmatpush.bf16.msra.mxu0 0
    %570 = vmatpush.bf16.msra.mxu0 0
    %571 = vmatpush.bf16.msra.mxu0 0
    %572 = vmatpush.bf16.msra.mxu0 %v345
    %573 = vmatpush.bf16.msra.mxu0 %v343
    %574 = vmatpush.bf16.msra.mxu0 %v341
    %575 = vmatpush.bf16.msra.mxu0 %v339
    %576 = vmatmul.bf16.gmra.mxu0 %v566
    %v577 = vpop.f32.mrf.mxu0
    %v578 = vadd.f32 0.0, %v577
    %v579 = vpop.f32.mrf.mxu0
    %580 = vdwg.mxu0
    %581 = vmatpush.bf16.msra.mxu0 0
    %582 = vmatpush.bf16.msra.mxu0 0
    %583 = vmatpush.bf16.msra.mxu0 0
    %584 = vmatpush.bf16.msra.mxu0 0
    %585 = vmatpush.bf16.msra.mxu0 %v346
    %586 = vmatpush.bf16.msra.mxu0 %v344
    %587 = vmatpush.bf16.msra.mxu0 %v342
    %588 = vmatpush.bf16.msra.mxu0 %v340
    %589 = vmatmul.bf16.gmra.mxu0 %v566
    %v590 = vpop.f32.mrf.mxu0
    %v591 = vadd.f32 0.0, %v590
    %v592 = vpop.f32.mrf.mxu0
    %593 = vdwg.mxu0
    %v594 = vadd.f32 %v558, %v578
    %v595 = vadd.f32 %v559, %v591
    %v596 = vtanh.pop %v594
    %v597 = vtanh.pop %v595
    %v598 = vmul.f32 %v596, 0.5
    %v599 = vadd.f32 %v598, 0.5
    %v600 = vmul.f32 %v597, 0.5
    %v601 = vadd.f32 %v600, 0.5
    %v603 = vrot.slane %v541, 4
    %v605 = vmul.f32 %v601, %v603
    %607 = vrot.lane.b32.xlu0 %v596, 64
    %v608 = vpop.permute.xlu0 %607
    %v610 = vmul.f32 %v599, %v608
    %v611 = vadd.f32 %v605, %v610
    %v612 = vtanh.pop %v611
    %614 = vrot.lane.b32.xlu0 %v612, 64
    %v615 = vpop.permute.xlu0 %614
    %v617 = vmul.f32 %v601, %v615
    %v618 = vmax.f32 %v551, %v617
    %v619 = vpack.c.bf16 %v617, %v617
    %621 = vrot.lane.b32.xlu0 %v619, 64
    %v622 = vpop.permute.xlu0 %621
    %v624 = vsel %vm145, %v622, 0
    %626 = vmatpush.bf16.msra.mxu0 0
    %627 = vmatpush.bf16.msra.mxu0 0
    %628 = vmatpush.bf16.msra.mxu0 0
    %629 = vmatpush.bf16.msra.mxu0 0
    %630 = vmatpush.bf16.msra.mxu0 %v345
    %631 = vmatpush.bf16.msra.mxu0 %v343
    %632 = vmatpush.bf16.msra.mxu0 %v341
    %633 = vmatpush.bf16.msra.mxu0 %v339
    %634 = vmatmul.bf16.gmra.mxu0 %v624
    %v635 = vpop.f32.mrf.mxu0
    %v636 = vadd.f32 0.0, %v635
    %v637 = vpop.f32.mrf.mxu0
    %638 = vdwg.mxu0
    %639 = vmatpush.bf16.msra.mxu0 0
    %640 = vmatpush.bf16.msra.mxu0 0
    %641 = vmatpush.bf16.msra.mxu0 0
    %642 = vmatpush.bf16.msra.mxu0 0
    %643 = vmatpush.bf16.msra.mxu0 %v346
    %644 = vmatpush.bf16.msra.mxu0 %v344
    %645 = vmatpush.bf16.msra.mxu0 %v342
    %646 = vmatpush.bf16.msra.mxu0 %v340
    %647 = vmatmul.bf16.gmra.mxu0 %v624
    %v648 = vpop.f32.mrf.mxu0
    %v649 = vadd.f32 0.0, %v648
    %v650 = vpop.f32.mrf.mxu0
    %651 = vdwg.mxu0
    %v654 = vrot.slane %v636, 4
    %v655 = vrot.slane %v649, 4
    %v658 = vadd.f32 %v558, %v654
    %v659 = vadd.f32 %v559, %v655
    %v660 = vtanh.pop %v658
    %v661 = vtanh.pop %v659
    %v662 = vmul.f32 %v660, 0.5
    %v663 = vadd.f32 %v662, 0.5
    %v664 = vmul.f32 %v661, 0.5
    %v665 = vadd.f32 %v664, 0.5
    %v667 = vrot.slane %v611, 4
    %v669 = vmul.f32 %v665, %v667
    %671 = vrot.lane.b32.xlu0 %v660, 64
    %v672 = vpop.permute.xlu0 %671
    %v674 = vmul.f32 %v663, %v672
    %v675 = vadd.f32 %v669, %v674
    %v676 = vtanh.pop %v675
    %678 = vrot.lane.b32.xlu0 %v676, 64
    %v679 = vpop.permute.xlu0 %678
    %v681 = vmul.f32 %v665, %v679
    %v683 = vrot.slane %v681, 4
    %v685 = vmax.f32 %v618, %v683
    %v688 = vrot.slane %v248, 4
    %v689 = vrot.slane %v267, 4
    %v692 = vadd.f32 %v169, %v688
    %v693 = vadd.f32 %v188, %v689
    %v694 = vpack.c.bf16 %v681, %v681
    %v696 = vrot.slane %v694, 2
    %697 = vrot.lane.b32.xlu0 %v696, 64
    %v698 = vpop.permute.xlu0 %697
    %v700 = vsel %vm145, %v698, 0
    %702 = vmatpush.bf16.msra.mxu0 0
    %703 = vmatpush.bf16.msra.mxu0 0
    %704 = vmatpush.bf16.msra.mxu0 0
    %705 = vmatpush.bf16.msra.mxu0 0
    %706 = vmatpush.bf16.msra.mxu0 %v345
    %707 = vmatpush.bf16.msra.mxu0 %v343
    %708 = vmatpush.bf16.msra.mxu0 %v341
    %709 = vmatpush.bf16.msra.mxu0 %v339
    %710 = vmatmul.bf16.gmra.mxu0 %v700
    %v711 = vpop.f32.mrf.mxu0
    %v712 = vadd.f32 0.0, %v711
    %v713 = vpop.f32.mrf.mxu0
    %714 = vdwg.mxu0
    %715 = vmatpush.bf16.msra.mxu0 0
    %716 = vmatpush.bf16.msra.mxu0 0
    %717 = vmatpush.bf16.msra.mxu0 0
    %718 = vmatpush.bf16.msra.mxu0 0
    %719 = vmatpush.bf16.msra.mxu0 %v346
    %720 = vmatpush.bf16.msra.mxu0 %v344
    %721 = vmatpush.bf16.msra.mxu0 %v342
    %722 = vmatpush.bf16.msra.mxu0 %v340
    %723 = vmatmul.bf16.gmra.mxu0 %v700
    %v724 = vpop.f32.mrf.mxu0
    %v725 = vadd.f32 0.0, %v724
    %v726 = vpop.f32.mrf.mxu0
    %727 = vdwg.mxu0
    %v728 = vadd.f32 %v692, %v712
    %v729 = vadd.f32 %v693, %v725
    %v730 = vtanh.pop %v728
    %v731 = vtanh.pop %v729
    %v732 = vmul.f32 %v730, 0.5
    %v733 = vadd.f32 %v732, 0.5
    %v734 = vmul.f32 %v731, 0.5
    %v735 = vadd.f32 %v734, 0.5
    %v737 = vrot.slane %v675, 4
    %v739 = vmul.f32 %v735, %v737
    %741 = vrot.lane.b32.xlu0 %v730, 64
    %v742 = vpop.permute.xlu0 %741
    %v744 = vmul.f32 %v733, %v742
    %v745 = vadd.f32 %v739, %v744
    %v746 = vtanh.pop %v745
    %748 = vrot.lane.b32.xlu0 %v746, 64
    %v749 = vpop.permute.xlu0 %748
    %v751 = vmul.f32 %v735, %v749
    %v752 = vmax.f32 %v685, %v751
    %v753 = vpack.c.bf16 %v751, %v751
    %755 = vrot.lane.b32.xlu0 %v753, 64
    %v756 = vpop.permute.xlu0 %755
    %v758 = vsel %vm145, %v756, 0
    %760 = vmatpush.bf16.msra.mxu0 0
    %761 = vmatpush.bf16.msra.mxu0 0
    %762 = vmatpush.bf16.msra.mxu0 0
    %763 = vmatpush.bf16.msra.mxu0 0
    %764 = vmatpush.bf16.msra.mxu0 %v345
    %765 = vmatpush.bf16.msra.mxu0 %v343
    %766 = vmatpush.bf16.msra.mxu0 %v341
    %767 = vmatpush.bf16.msra.mxu0 %v339
    %768 = vmatmul.bf16.gmra.mxu0 %v758
    %v769 = vpop.f32.mrf.mxu0
    %v770 = vadd.f32 0.0, %v769
    %v771 = vpop.f32.mrf.mxu0
    %772 = vdwg.mxu0
    %773 = vmatpush.bf16.msra.mxu0 0
    %774 = vmatpush.bf16.msra.mxu0 0
    %775 = vmatpush.bf16.msra.mxu0 0
    %776 = vmatpush.bf16.msra.mxu0 0
    %777 = vmatpush.bf16.msra.mxu0 %v346
    %778 = vmatpush.bf16.msra.mxu0 %v344
    %779 = vmatpush.bf16.msra.mxu0 %v342
    %780 = vmatpush.bf16.msra.mxu0 %v340
    %781 = vmatmul.bf16.gmra.mxu0 %v758
    %v782 = vpop.f32.mrf.mxu0
    %v783 = vadd.f32 0.0, %v782
    %v784 = vpop.f32.mrf.mxu0
    %785 = vdwg.mxu0
    %v788 = vrot.slane %v770, 4
    %v789 = vrot.slane %v783, 4
    %v792 = vadd.f32 %v692, %v788
    %v793 = vadd.f32 %v693, %v789
    %v794 = vtanh.pop %v792
    %v795 = vtanh.pop %v793
    %v796 = vmul.f32 %v794, 0.5
    %v797 = vadd.f32 %v796, 0.5
    %v798 = vmul.f32 %v795, 0.5
    %v799 = vadd.f32 %v798, 0.5
    %v801 = vrot.slane %v745, 4
    %v803 = vmul.f32 %v799, %v801
    %805 = vrot.lane.b32.xlu0 %v794, 64
    %v806 = vpop.permute.xlu0 %805
    %v808 = vmul.f32 %v797, %v806
    %v809 = vadd.f32 %v803, %v808
    %v810 = vtanh.pop %v809
    %812 = vrot.lane.b32.xlu0 %v810, 64
    %v813 = vpop.permute.xlu0 %812
    %v815 = vmul.f32 %v799, %v813
    %v817 = vrot.slane %v815, 4
    %v819 = vmax.f32 %v752, %v817
    %v821 = vrot.slane %v819, 2
    %v823 = vmul.f32 %v819, %v821
    %825 = vrot.lane.b32.xlu0 %v823, 64
    %v826 = vpop.permute.xlu0 %825
    %vm828 = vcmask 517120
    %v829 = vsel %vm828, %v826, 0.0
    %830 = vadd.xlane.f32.xlu0 %v829
    %v831 = vpop.xlane.xlu0 %830
    %v832 = vmul.f32 %v819, %v819
    %834 = vrot.lane.b32.xlu0 %v832, 64
    %v835 = vpop.permute.xlu0 %834
    %v837 = vsel %vm828, %v835, 0.0
    %838 = vadd.xlane.f32.xlu0 %v837
    %v839 = vpop.xlane.xlu0 %838
    %v840 = vrsqrt.pop %v839
    %v841 = vmul.f32 %v840, %v839
    %v842 = vmul.f32 %v841, %v840
    %v843 = vmul.f32 0.5, %v842
    %v844 = vsub.f32 1.5, %v843
    %v845 = vmul.f32 %v840, %v844
    %v846 = vmul.f32 %v839, %v845
    %vm847 = vcmp.eq.f32.partialorder %v839, inf
    %v848 = vsel %vm847, %v839, %v846
    %vm849 = vcmp.eq.f32.partialorder %v839, 0.0
    %v850 = vand.u32 %v839, 2147483648
    %v851 = vsel %vm849, %v850, %v848
    %vm852 = vcmask 519170
    %v853 = vsel %vm852, %v835, 0.0
    %854 = vadd.xlane.f32.xlu0 %v853
    %v855 = vpop.xlane.xlu0 %854
    %v856 = vrsqrt.pop %v855
    %v857 = vmul.f32 %v856, %v855
    %v858 = vmul.f32 %v857, %v856
    %v859 = vmul.f32 0.5, %v858
    %v860 = vsub.f32 1.5, %v859
    %v861 = vmul.f32 %v856, %v860
    %v862 = vmul.f32 %v855, %v861
    %vm863 = vcmp.eq.f32.partialorder %v855, inf
    %v864 = vsel %vm863, %v855, %v862
    %vm865 = vcmp.eq.f32.partialorder %v855, 0.0
    %v866 = vand.u32 %v855, 2147483648
    %v867 = vsel %vm865, %v866, %v864
    %v868 = vmax.f32 %v851, 1e-08
    %v869 = vmax.f32 %v867, 1e-08
    %v871 = vrot.slane %v869, 2
    %v873 = vmul.f32 %v868, %v871
    %v874 = vrcp.pop %v873
    %v875 = vmul.f32 %v873, %v874
    %v876 = vsub.f32 1.0, %v875
    %v877 = vmul.f32 %v874, %v876
    %v878 = vadd.f32 %v874, %v877
    %vm879 = vweird.f32 %v873
    %vm880 = vweird.f32 %v874
    %vm881 = vmor %vm879, %vm880
    %v882 = vsel %vm881, %v874, %v878
    %v883 = vand.u32 2147483647, %v873
    %vm884 = vcmp.eq.f32.partialorder %v883, 8.507059e+37
    %v885 = vand.u32 %v873, 2147483648
    %v886 = vor.u32 1.1754944e-38, %v885
    %v887 = vsel %vm884, %v886, %v882
    %v888 = vmul.f32 %v831, %v887
    %vm889 = vcmask 1024
    %890 = vst.msk [vmem:[%s4] sm:$0x3] %vm889, %v888
    // Predicated region
    $region30: #{qa_lstm_forward.1} parent=1 // pred_check
      _
    $region31: #{qa_lstm_forward.1} parent=1 // pred_check_branch
      %892 = sbr.rel (0) target = $region33
    $region32: #{qa_lstm_forward.1} parent=1 // pred_region
      _
    $region33: #{qa_lstm_forward.1} parent=1 // pred_fallthru
      _
    // Predicated region
    $region34: #{qa_lstm_forward.1} parent=1 // pred_check
      _
    $region35: #{qa_lstm_forward.1} parent=1 // pred_check_branch
      %894 = sbr.rel (0) target = $region37
    $region36: #{qa_lstm_forward.1} parent=1 // pred_region
      _
    $region37: #{qa_lstm_forward.1} parent=1 // pred_fallthru
      _
    %895 = vsyncpa [#allocation3], 1
    %896 = vsyncpa [#allocation5], 1

</llo_original>
